<compile_context>
chip_gen: v6e
topology: v6e:2x2x1
jax: 0.10.0
libtpu: 0.0.40
codegen_flags: <defaults>
</compile_context>

<pallas_src>
import jax
import jax.numpy as jnp
from jax import lax
from jax.experimental import pallas as pl
from jax.experimental.pallas import tpu as pltpu


def pooler_kernel(x_ref, w_ref, b_ref, o_ref):
    # x_ref: [tb, H]   first-token activations for this batch tile.
    # w_ref: [tn, H]   Linear weight rows, native PyTorch [out_features, in_features].
    # b_ref: [1, tn]   bias slice.
    # o_ref: [tb, tn]  pooled output tile (lane-dense on tn).
    x = x_ref[...].astype(w_ref.dtype)          # no-op in the f32 path; bf16 if weight is bf16
    # y = x @ W.T : contract the in_features axis of both operands (trans-B on the MXU).
    y = lax.dot_general(
        x, w_ref[...],
        dimension_numbers=(((1,), (1,)), ((), ())),
        preferred_element_type=jnp.float32,
    )
    y = y + b_ref[...].astype(jnp.float32)      # broadcast bias over the batch tile
    o_ref[...] = jnp.tanh(y).astype(o_ref.dtype)


def _vmem_capacity_bytes():
    """Physical VMEM of this generation; conservative 64 MiB (v7x per-TC) fallback."""
    try:
        return int(pltpu.get_tpu_info().vmem_capacity_bytes)
    except Exception:
        return 64 << 20


def _num_tensorcores():
    """TensorCores sharing the grid: 2 on v7x (megacore-style sharding), else 1."""
    try:
        kind = jax.devices()[0].device_kind.lower()
        if "v7" in kind or "7x" in kind:
            return 2
    except Exception:
        pass
    return 1


def _pick_batch_tile(B):
    if B <= 128:
        return B
    for c in (128, 64, 32, 16, 8):
        if B % c == 0:
            return c
    return B


def pooler(hidden_states, weight, bias):
    """BERT Pooler forward.

    hidden_states: [B, S, H]; weight: [H, H] (PyTorch [out, in] layout); bias: [H].
    The weight is consumed in whatever dtype it is stored in (f32 or bf16) — no
    wrapper-side cast, so the H*H HBM stream is read exactly once.
    """
    B, S, H = hidden_states.shape
    assert weight.shape == (H, H) and bias.shape == (H,)

    # First-token slice in the wrapper: ~2*B*H bytes (immaterial next to the H*H
    # weight stream) and gives the kernel a contiguous [B, H] block at any S.
    first_tok = hidden_states[:, 0]             # [B, H]
    bias2d = bias.reshape(1, H)                 # keep bias 2-D for a clean (1, tn) block

    x_bytes = jnp.dtype(first_tok.dtype).itemsize
    w_bytes = jnp.dtype(weight.dtype).itemsize
    out_bytes = x_bytes

    tb = _pick_batch_tile(B)
    nb = B // tb

    cores = _num_tensorcores()
    vmem_cap = _vmem_capacity_bytes()
    budget = vmem_cap // 2                      # leave half of VMEM for Mosaic scratch etc.

    def working_set(tn, w_bufs):
        return (w_bufs * tn * H * w_bytes       # weight tiles (multi-buffered)
                + 2 * tb * H * x_bytes          # x tiles (double-buffered)
                + 2 * tb * tn * out_bytes       # output tiles
                + 2 * tn * 4)                   # bias tiles

    # Candidate out-feature tiles: lane-aligned (128-multiple) divisors of H,
    # plus full-extent H (always a legal block).  Largest first.
    cands = sorted({t for t in range(128, H + 1, 128) if H % t == 0} | {H},
                   reverse=True)

    def pick(pred):
        for t in cands:
            if pred(t):
                return t
        return None

    # Prefer the largest tile that (a) fits the VMEM budget double-buffered and
    # (b) yields a number of out-feature tiles divisible by the TensorCore count,
    # so on v7x each core streams a disjoint share of the weight exactly once.
    tn = pick(lambda t: working_set(t, 2) <= budget and (H // t) % cores == 0)
    if tn is None:
        tn = pick(lambda t: working_set(t, 2) <= budget)
    if tn is None:
        tn = cands[-1]                          # smallest lane-aligned tile; vmem_limit grows to fit
    nn = H // tn

    # Third weight buffer only when there are enough tiles for it to matter and it
    # still fits the budget (keeps the DMA queue full on v7x's short per-tile DMAs).
    w_bufs = 3 if (nn >= 3 and working_set(tn, 3) <= budget) else 2

    ws = working_set(tn, w_bufs)
    # Generous headroom, capped at this generation's physical VMEM — but never
    # under-provision the actual working set (shrinking tn already handled above).
    vmem_limit = int(min(ws + (16 << 20), vmem_cap))
    vmem_limit = max(vmem_limit, ws + (2 << 20), 16 << 20)

    cost = pl.CostEstimate(
        flops=2 * B * H * H,
        transcendentals=B * H,
        bytes_accessed=H * H * w_bytes + B * H * x_bytes + B * H * out_bytes + H * 4,
    )

    w_spec_kwargs = {}
    if w_bufs == 3:
        w_spec_kwargs["pipeline_mode"] = pl.Buffered(3)
    w_spec = pl.BlockSpec((tn, H), lambda j, i: (j, 0), **w_spec_kwargs)

    out = pl.pallas_call(
        pooler_kernel,
        out_shape=jax.ShapeDtypeStruct((B, H), hidden_states.dtype),
        # Out-feature tiles OUTER (cross-core "parallel" axis; weight read from HBM
        # exactly once in total), batch tiles INNER ("arbitrary"; weight tile reused
        # across all batch tiles, only the tiny x tile is re-fetched).
        grid=(nn, nb),
        in_specs=[
            pl.BlockSpec((tb, H), lambda j, i: (i, 0)),
            w_spec,
            pl.BlockSpec((1, tn), lambda j, i: (0, j)),
        ],
        out_specs=pl.BlockSpec((tb, tn), lambda j, i: (i, j)),
        compiler_params=pltpu.CompilerParams(
            dimension_semantics=("parallel", "arbitrary"),
            vmem_limit_bytes=vmem_limit,
        ),
        cost_estimate=cost,
    )(first_tok, weight, bias2d)
    return out


def pooler_ref(hidden_states, weight, bias):
    # Pure-JAX reference matching torch semantics.
    first = hidden_states[:, 0]
    return jnp.tanh(first @ weight.T.astype(jnp.float32) + bias)


if __name__ == "__main__":
    # --- Test 1: small f32 shapes (grid collapses to (1, 1)), tight tolerance ---
    B, S, H = 2, 8, 32
    k_x, k_w, k_b = jax.random.split(jax.random.PRNGKey(0), 3)
    hidden_states = jax.random.normal(k_x, (B, S, H), dtype=jnp.float32)
    weight = jax.random.normal(k_w, (H, H), dtype=jnp.float32) * (1.0 / jnp.sqrt(H))
    bias = jax.random.normal(k_b, (H,), dtype=jnp.float32) * 0.01

    out = jax.block_until_ready(pooler(hidden_states, weight, bias))
    ref = pooler_ref(hidden_states, weight, bias)
    assert out.shape == (B, H)
    assert jnp.allclose(out, ref, atol=1e-5, rtol=1e-5)

    # --- Test 2: BERT-base hidden size; weights *stored* in bf16 (serving case),
    #             so the kernel streams half the HBM bytes with no wrapper cast. ---
    B2, S2, H2 = 4, 4, 768
    k_x2, k_w2, k_b2 = jax.random.split(jax.random.PRNGKey(1), 3)
    hs2 = jax.random.normal(k_x2, (B2, S2, H2), dtype=jnp.float32)
    w2_stored = (jax.random.normal(k_w2, (H2, H2), dtype=jnp.float32)
                 * (1.0 / jnp.sqrt(H2))).astype(jnp.bfloat16)   # params live in bf16
    b2 = jax.random.normal(k_b2, (H2,), dtype=jnp.float32) * 0.01

    out2 = jax.block_until_ready(pooler(hs2, w2_stored, b2))
    ref2 = pooler_ref(hs2, w2_stored, b2)
    assert out2.shape == (B2, H2)
    assert jnp.allclose(out2, ref2, atol=5e-2, rtol=5e-2)

    print("KERNEL_OK")
</pallas_src>

<mosaic_0001>
module attributes {stable_mosaic.version = 11 : i64} {
  func.func @pooler_kernel(%arg0: i32, %arg1: i32, %arg2: memref<2x32xf32, #tpu.memory_space<vmem>>, %arg3: memref<32x32xf32, #tpu.memory_space<vmem>>, %arg4: memref<1x32xf32, #tpu.memory_space<vmem>>, %arg5: memref<2x32xf32, #tpu.memory_space<vmem>>) attributes {dimension_semantics = [#tpu.dimension_semantics<parallel>, #tpu.dimension_semantics<arbitrary>], iteration_bounds = array<i64: 1, 1>, scalar_prefetch = 0 : i64, scratch_operands = 0 : i64, tpu.core_type = #tpu.core_type<tc>, window_params = [{transform_indices = @transform_0, window_bounds = array<i64: 2, 32>}, {transform_indices = @transform_1, window_bounds = array<i64: 32, 32>}, {transform_indices = @transform_2, window_bounds = array<i64: 1, 32>}, {transform_indices = @transform_3, window_bounds = array<i64: 2, 32>}]} {
    %c0 = arith.constant 0 : index
    %c0_0 = arith.constant 0 : index
    %0 = vector.load %arg2[%c0, %c0_0] : memref<2x32xf32, #tpu.memory_space<vmem>>, vector<2x32xf32>
    %c0_1 = arith.constant 0 : index
    %c0_2 = arith.constant 0 : index
    %1 = vector.load %arg3[%c0_1, %c0_2] : memref<32x32xf32, #tpu.memory_space<vmem>>, vector<32x32xf32>
    %cst = arith.constant dense<0.000000e+00> : vector<2x32xf32>
    %2 = tpu.matmul %0, %1, %cst {dimension_numbers = #tpu.dot_dimension_numbers<[1], [1], [0], [0], [0, 0, 1, 0], [], []>} : vector<2x32xf32>, vector<32x32xf32>, vector<2x32xf32> -> vector<2x32xf32>
    %c0_3 = arith.constant 0 : index
    %c0_4 = arith.constant 0 : index
    %3 = vector.load %arg4[%c0_3, %c0_4] : memref<1x32xf32, #tpu.memory_space<vmem>>, vector<1x32xf32>
    %4 = vector.broadcast %3 : vector<1x32xf32> to vector<2x32xf32>
    %5 = arith.addf %2, %4 : vector<2x32xf32>
    %6 = math.tanh %5 : vector<2x32xf32>
    %c0_5 = arith.constant 0 : index
    %c0_6 = arith.constant 0 : index
    %7 = vector.load %arg5[%c0_5, %c0_6] : memref<2x32xf32, #tpu.memory_space<vmem>>, vector<2x32xf32>
    tpu.vector_store %arg5[%c0_5, %c0_6], %6 {strides = array<i32>} : memref<2x32xf32, #tpu.memory_space<vmem>>, vector<2x32xf32>,
    return
  }
  func.func @transform_0(%arg0: i32, %arg1: i32) -> (i32, i32) {
    %c0_i32 = arith.constant 0 : i32
    %c0_i32_0 = arith.constant 0 : i32
    return %arg1, %c0_i32 : i32, i32
  }
  func.func @transform_1(%arg0: i32, %arg1: i32) -> (i32, i32) {
    %c0_i32 = arith.constant 0 : i32
    %c0_i32_0 = arith.constant 0 : i32
    return %arg0, %c0_i32 : i32, i32
  }
  func.func @transform_2(%arg0: i32, %arg1: i32) -> (i32, i32) {
    %c0_i32 = arith.constant 0 : i32
    %c0_i32_0 = arith.constant 0 : i32
    return %c0_i32, %arg0 : i32, i32
  }
  func.func @transform_3(%arg0: i32, %arg1: i32) -> (i32, i32) {
    %c0_i32 = arith.constant 0 : i32
    return %arg1, %arg0 : i32, i32
  }
}

</mosaic_0001>

<llo_original>
// kernel: tpu_custom_call.1
$region0: #{tpu_custom_call.1}
  #allocation0 [shape = 'u32[]', space=smem, size = 0x4, offset = 0x4, fixed_abs, tag = 'smem constant byte address 0x4 - core index']
  #allocation1 [shape = 'u32[144,128]{1,0:T(1,128)}', space=vmem, size = 0x12000, scoped, tag = 'internal scratch']
  %s0 = inlined_call_operand.hbm [shape: f32[2,32], index: 0, kind: input, shape index: {}]
  %s1 = inlined_call_operand.hbm [shape: f32[32,32], index: 1, kind: input, shape index: {}]
  %s2 = inlined_call_operand.vmem [shape: f32[1,32], index: 2, kind: input, shape index: {}]
  %s3 = inlined_call_operand.hbm [shape: f32[2,32], index: 3, kind: output, shape index: {}]
  %s4 = sld [smem:[#allocation0]]
  $region30: #{tpu_custom_call.1} parent=0
    _
  %s6 = ssub.s32 1, %s4
  %s7 = scalar_select 0, %s6, %s4
  $region1: #{tpu_custom_call.1} parent=0
    #allocation2 [shape = 'u8[1024]{0}', space=vmem, size = 0x400, scoped, tag = 'input window, operand 0, single buffered']
    #allocation3 [shape = 's32[1]{0}', space=sflag, size = 0x4, scoped, tag = 'scoped memory for tpu_custom_call.1']
    #allocation4 [shape = 's32[1]{0}', space=sflag, size = 0x4, scoped, tag = 'scoped memory for tpu_custom_call.1']
    #allocation5 [shape = 'u8[16384]{0}', space=vmem, size = 0x4000, scoped, tag = 'input window, operand 1, single buffered']
    #allocation6 [shape = 's32[1]{0}', space=sflag, size = 0x4, scoped, tag = 'scoped memory for tpu_custom_call.1']
    #allocation7 [shape = 'u8[1024]{0}', space=vmem, size = 0x400, scoped, tag = 'output window, operand 0, single buffered']
    %8 = vsyncpa [#allocation3], 0
    %9 = vsyncpa [#allocation6], 0
    %10 = vsyncpa [#allocation4], 0
    // Predicated region
    $region2: #{tpu_custom_call.1} parent=1 // pred_check
      _
    $region3: #{tpu_custom_call.1} parent=1 // pred_check_branch
      %12 = sbr.rel (0) target = $region5
    $region4: #{tpu_custom_call.1} parent=1 // pred_region
      %s14 = ssub.s32 32, 32
      %15 = vsyncadd [#allocation3], %s14
      %s17 = sshll.u32 [#allocation2], 4
      %s18 = int_to_ptr.vmem [resolvable:$true] %s17
      %20 = dma.hbm_to_vmem [thread:$0]  %s0, 32, %s18, [#allocation3]
    $region5: #{tpu_custom_call.1} parent=1 // pred_fallthru
      _
    // Predicated region
    $region6: #{tpu_custom_call.1} parent=1 // pred_check
      _
    $region7: #{tpu_custom_call.1} parent=1 // pred_check_branch
      %22 = sbr.rel (0) target = $region9
    $region8: #{tpu_custom_call.1} parent=1 // pred_region
      %s24 = ssub.s32 512, 512
      %25 = vsyncadd [#allocation6], %s24
      %s26 = sshll.u32 [#allocation5], 4
      %s27 = int_to_ptr.vmem [resolvable:$true] %s26
      %32 = dma.hbm_to_vmem [thread:$0]  %s1, 512, %s27, [#allocation6], 128, 128, 8
    $region9: #{tpu_custom_call.1} parent=1 // pred_fallthru
      _
    // Predicated region
    $region10: #{tpu_custom_call.1} parent=1 // pred_check
      _
    $region11: #{tpu_custom_call.1} parent=1 // pred_check_branch
      %34 = sbr.rel (0) target = $region13
    $region12: #{tpu_custom_call.1} parent=1 // pred_region
      _
    $region13: #{tpu_custom_call.1} parent=1 // pred_fallthru
      _
    // Predicated region
    $region14: #{tpu_custom_call.1} parent=1 // pred_check
      _
    $region15: #{tpu_custom_call.1} parent=1 // pred_check_branch
      %36 = sbr.rel (0) target = $region17
    $region16: #{tpu_custom_call.1} parent=1 // pred_region
      %37 = dma.done [#allocation3], 32
    $region17: #{tpu_custom_call.1} parent=1 // pred_fallthru
      _
    // Predicated region
    $region18: #{tpu_custom_call.1} parent=1 // pred_check
      _
    $region19: #{tpu_custom_call.1} parent=1 // pred_check_branch
      %39 = sbr.rel (0) target = $region21
    $region20: #{tpu_custom_call.1} parent=1 // pred_region
      %40 = dma.done [#allocation6], 512
    $region21: #{tpu_custom_call.1} parent=1 // pred_fallthru
      _
    %v41 = vld [vmem:[#allocation2] sm:$0x3]
    %v42 = vld [vmem:[#allocation5] sm:$0xff]
    %v43 = vld [vmem:[#allocation5 + $0x8] sm:$0xff]
    %v44 = vld [vmem:[#allocation5 + $0x10] sm:$0xff]
    %v45 = vld [vmem:[#allocation5 + $0x18] sm:$0xff]
    %v46 = vld [vmem:[%s2] sm:$0x1]
    %v48 = vlaneseq
    %v49 = vshrl.u32 %v48, 7
    %v50 = vsub.s32 0, %v49
    %v51 = vrot.slane %v46, %v50
    %vm53 = vcmask 261120
    %v55 = vsel %vm53, %v41, 0
    %v58 = vsel %vm53, %v42, 0
    %v61 = vsel %vm53, %v43, 0
    %v64 = vsel %vm53, %v44, 0
    %v67 = vsel %vm53, %v45, 0
    %69 = vmatprep.subr.mxu0 0.0
    %70 = vmatpush1.xpose.msra.mxu0 0.0
    %71 = vmatprep.subr.mxu0 0.0
    %72 = vmatpush1.xpose.msra.mxu0 0.0
    %73 = vmatprep.subr.mxu0 0.0
    %74 = vmatpush1.xpose.msra.mxu0 0.0
    %75 = vmatprep.subr.mxu0 0.0
    %76 = vmatpush1.xpose.msra.mxu0 0.0
    %77 = vmatprep.subr.mxu0 0.0
    %78 = vmatpush1.xpose.msra.mxu0 0.0
    %79 = vmatprep.subr.mxu0 0.0
    %80 = vmatpush1.xpose.msra.mxu0 0.0
    %81 = vmatprep.subr.mxu0 0.0
    %82 = vmatpush1.xpose.msra.mxu0 0.0
    %83 = vmatprep.subr.mxu0 0.0
    %84 = vmatpush1.xpose.msra.mxu0 0.0
    %85 = vmatprep.subr.mxu0 0.0
    %86 = vmatpush1.xpose.msra.mxu0 0.0
    %87 = vmatprep.subr.mxu0 0.0
    %88 = vmatpush1.xpose.msra.mxu0 0.0
    %89 = vmatprep.subr.mxu0 0.0
    %90 = vmatpush1.xpose.msra.mxu0 0.0
    %91 = vmatprep.subr.mxu0 0.0
    %92 = vmatpush1.xpose.msra.mxu0 0.0
    %93 = vmatprep.subr.mxu0 0.0
    %94 = vmatpush1.xpose.msra.mxu0 %v67
    %95 = vmatprep.subr.mxu0 0.0
    %96 = vmatpush1.xpose.msra.mxu0 %v64
    %97 = vmatprep.subr.mxu0 0.0
    %98 = vmatpush1.xpose.msra.mxu0 %v61
    %99 = vmatprep.subr.mxu0 0.0
    %100 = vmatpush1.xpose.msra.mxu0 %v58
    %101 = vmatprep.subr.mxu0 0.0
    %102 = vmatpush2.xpose.msra.mxu0 0.0
    %103 = vmatprep.subr.mxu0 0.0
    %104 = vmatpush2.xpose.msra.mxu0 0.0
    %105 = vmatprep.subr.mxu0 0.0
    %106 = vmatpush2.xpose.msra.mxu0 0.0
    %107 = vmatprep.subr.mxu0 0.0
    %108 = vmatpush2.xpose.msra.mxu0 0.0
    %109 = vmatprep.subr.mxu0 0.0
    %110 = vmatpush2.xpose.msra.mxu0 0.0
    %111 = vmatprep.subr.mxu0 0.0
    %112 = vmatpush2.xpose.msra.mxu0 0.0
    %113 = vmatprep.subr.mxu0 0.0
    %114 = vmatpush2.xpose.msra.mxu0 0.0
    %115 = vmatprep.subr.mxu0 0.0
    %116 = vmatpush2.xpose.msra.mxu0 0.0
    %117 = vmatprep.subr.mxu0 0.0
    %118 = vmatpush2.xpose.msra.mxu0 0.0
    %119 = vmatprep.subr.mxu0 0.0
    %120 = vmatpush2.xpose.msra.mxu0 0.0
    %121 = vmatprep.subr.mxu0 0.0
    %122 = vmatpush2.xpose.msra.mxu0 0.0
    %123 = vmatprep.subr.mxu0 0.0
    %124 = vmatpush2.xpose.msra.mxu0 0.0
    %125 = vmatprep.subr.mxu0 0.0
    %126 = vmatpush2.xpose.msra.mxu0 0.0
    %127 = vmatprep.subr.mxu0 0.0
    %128 = vmatpush2.xpose.msra.mxu0 0.0
    %129 = vmatprep.subr.mxu0 0.0
    %130 = vmatpush2.xpose.msra.mxu0 0.0
    %131 = vmatprep.subr.mxu0 0.0
    %132 = vmatpush2.xpose.msra.mxu0 0.0
    %133 = vmatprep.mubr.f32.mxu0 0.0
    %134 = vmatmul.mubr.f32.gmra.mxu0 %v55
    %v135 = vpop.f32.mrf.mxu0
    %v136 = vadd.f32 %v51, %v135
    %v137 = vpop.f32.mrf.mxu0
    %138 = vdwg.mxu0
    %v139 = vtanh.pop %v136
    %vm140 = vcmask 254976
    %141 = vst.msk [vmem:[#allocation7] sm:$0x3] %vm140, %v139
    // Predicated region
    $region22: #{tpu_custom_call.1} parent=1 // pred_check
      _
    $region23: #{tpu_custom_call.1} parent=1 // pred_check_branch
      %143 = sbr.rel (0) target = $region25
    $region24: #{tpu_custom_call.1} parent=1 // pred_region
      %s145 = ssub.s32 32, 32
      %146 = vsyncadd [#allocation4], %s145
      %s148 = sshll.u32 [#allocation7], 4
      %s149 = int_to_ptr.vmem [resolvable:$true] %s148
      %151 = dma.vmem_to_hbm [thread:$0]  %s149, 32, %s3, [#allocation4]
    $region25: #{tpu_custom_call.1} parent=1 // pred_fallthru
      _
    // Predicated region
    $region26: #{tpu_custom_call.1} parent=1 // pred_check
      _
    $region27: #{tpu_custom_call.1} parent=1 // pred_check_branch
      %153 = sbr.rel (0) target = $region29
    $region28: #{tpu_custom_call.1} parent=1 // pred_region
      %154 = dma.done [#allocation4], 32
    $region29: #{tpu_custom_call.1} parent=1 // pred_fallthru
      _
    %155 = vsyncpa [#allocation3], 1
    %156 = vsyncpa [#allocation6], 1
    %157 = vsyncpa [#allocation4], 1

</llo_original>
